<compile_context>
chip_gen: v5e
topology: v5e:2x2
jax: 0.10.0
libtpu: 0.0.40
codegen_flags: <defaults>
</compile_context>

<pallas_src>
import functools

import jax
import jax.numpy as jnp
from jax.experimental import pallas as pl
from jax.experimental.pallas import tpu as pltpu


_EPS = 1e-5          # torch.nn.BatchNorm1d default
_NEG_SLOPE = 0.01    # torch.nn.LeakyReLU default
_LANE = 128          # TPU vreg lane width; layer output widths padded to this
_NEG_INF = -1e30     # finite "-inf" baked into padded final-bias lanes


def _actor_kernel(x_ref,
                  w1_ref, b1_ref, g1_ref, be1_ref,
                  w2_ref, b2_ref, g2_ref, be2_ref,
                  w3_ref, b3_ref,
                  out_ref):
    x = x_ref[...].astype(jnp.float32)
    inv_n = jnp.float32(1.0 / x.shape[0])

    def linear(h, w_ref, b_ref):
        return jnp.dot(h, w_ref[...], preferred_element_type=jnp.float32) + b_ref[...]

    def bn_leaky(h, g_ref, be_ref):
        # Fused single pass over the batch: sum and sum-of-squares together,
        # biased var = E[h^2] - mu^2 (torch training-mode BN). Affine folded
        # into a single per-feature scale/shift -> one FMA per element.
        s1 = jnp.sum(h, axis=0, keepdims=True)
        s2 = jnp.sum(h * h, axis=0, keepdims=True)
        mu = s1 * inv_n
        var = jnp.maximum(s2 * inv_n - mu * mu, 0.0)          # guard cancellation
        scale = g_ref[...] * jax.lax.rsqrt(var + _EPS)        # (1, F)
        shift = be_ref[...] - mu * scale                      # (1, F)
        h = h * scale + shift
        return jnp.where(h > 0, h, _NEG_SLOPE * h)             # LeakyReLU

    # Block 1 + Block 2 (all widths lane-dense: multiples of 128)
    h = bn_leaky(linear(x, w1_ref, b1_ref), g1_ref, be1_ref)
    h = bn_leaky(linear(h, w2_ref, b2_ref), g2_ref, be2_ref)

    # Head + softmax(dim=-1). Padded action lanes already hold -1e30 because
    # the padded final bias carries that value (and their weight columns are
    # zero), so exp() drives them to exactly 0 with no in-kernel masking.
    logits = linear(h, w3_ref, b3_ref)                         # (B, 128)
    m = jnp.max(logits, axis=-1, keepdims=True)
    e = jnp.exp(logits - m)
    denom = jnp.sum(e, axis=-1, keepdims=True)
    inv = pl.reciprocal(denom, approx=True)                    # EUP slot (cheap)
    inv = inv * (2.0 - denom * inv)                            # 1 NR step -> full f32
    out_ref[...] = (e * inv).astype(out_ref.dtype)             # lane-dense store


@functools.partial(jax.jit, static_argnames=("action_size",))
def model_actor_forward(x, padded_params, *, action_size):
    """x: (B, state_size) float32. padded_params: lane-padded weights (see
    pad_params_for_tpu). Returns (B, action_size) softmax probabilities."""
    B, S = x.shape
    p = padded_params
    HP = p["w1"].shape[1]
    AP = p["w3"].shape[1]

    operands = (
        x,
        p["w1"], p["b1"], p["g1"], p["be1"],
        p["w2"], p["b2"], p["g2"], p["be2"],
        p["w3"], p["b3"],
    )

    # Advisory cost estimate so XLA schedules this tiny custom call sensibly.
    flops = 2 * B * (S * HP + HP * HP + HP * AP) + 24 * B * HP
    transcendentals = B * AP + 2 * HP + B                      # exp + rsqrt + recip
    bytes_accessed = 4 * (int(x.size) + sum(int(v.size) for v in operands[1:]) + B * AP)

    vmem = pl.BlockSpec(memory_space=pltpu.MemorySpace.VMEM)
    out_padded = pl.pallas_call(
        _actor_kernel,
        out_shape=jax.ShapeDtypeStruct((B, AP), jnp.float32),
        in_specs=[vmem] * len(operands),
        out_specs=vmem,
        cost_estimate=pl.CostEstimate(flops=flops,
                                      transcendentals=transcendentals,
                                      bytes_accessed=bytes_accessed),
        compiler_params=pltpu.CompilerParams(),
    )(*operands)
    return out_padded[:, :action_size]


def init_params(key, state_size, action_size, hidden_size):
    """Deterministic init mirroring PyTorch defaults (uniform +/- 1/sqrt(fan_in)
    for Linear; BatchNorm weight=1, bias=0). Biases/affine params kept as
    (1, F) for clean 2-D broadcasting. Returned UNPADDED (torch-faithful)."""
    ks = jax.random.split(key, 6)

    def lin(kw, kb, fan_in, fan_out):
        bound = 1.0 / jnp.sqrt(jnp.float32(fan_in))
        w = jax.random.uniform(kw, (fan_in, fan_out), jnp.float32, -bound, bound)
        b = jax.random.uniform(kb, (1, fan_out), jnp.float32, -bound, bound)
        return w, b

    w1, b1 = lin(ks[0], ks[1], state_size, hidden_size)
    w2, b2 = lin(ks[2], ks[3], hidden_size, hidden_size)
    w3, b3 = lin(ks[4], ks[5], hidden_size, action_size)
    return dict(
        w1=w1, b1=b1,
        g1=jnp.ones((1, hidden_size), jnp.float32),
        be1=jnp.zeros((1, hidden_size), jnp.float32),
        w2=w2, b2=b2,
        g2=jnp.ones((1, hidden_size), jnp.float32),
        be2=jnp.zeros((1, hidden_size), jnp.float32),
        w3=w3, b3=b3,
    )


def pad_params_for_tpu(params, hidden_size, action_size, lane=_LANE):
    """Zero-pad all layer output widths to a multiple of the 128-lane vreg.
    Padded hidden channels stay exactly 0 through Linear/BN/LeakyReLU, and
    padded action lanes get bias -1e30 (their weight columns are zero), so
    softmax drives them to exactly 0 and the real outputs are unchanged."""
    hp = -(-hidden_size // lane) * lane
    ap = -(-action_size // lane) * lane

    def pad2(a, rows, cols, cval=0.0):
        return jnp.pad(a, ((0, rows - a.shape[0]), (0, cols - a.shape[1])),
                       constant_values=cval)

    state_size = params["w1"].shape[0]
    return dict(
        w1=pad2(params["w1"], state_size, hp),
        b1=pad2(params["b1"], 1, hp),
        g1=pad2(params["g1"], 1, hp, cval=1.0),
        be1=pad2(params["be1"], 1, hp),
        w2=pad2(params["w2"], hp, hp),
        b2=pad2(params["b2"], 1, hp),
        g2=pad2(params["g2"], 1, hp, cval=1.0),
        be2=pad2(params["be2"], 1, hp),
        w3=pad2(params["w3"], hp, ap),
        b3=pad2(params["b3"], 1, ap, cval=_NEG_INF),
    )


def _reference_forward(x, p):
    """Pure-JAX reference with unpadded params (torch training-mode semantics)."""
    def bn(h):
        mu = jnp.mean(h, axis=0, keepdims=True)
        var = jnp.mean((h - mu) ** 2, axis=0, keepdims=True)   # biased
        return (h - mu) / jnp.sqrt(var + _EPS)

    h = x @ p["w1"] + p["b1"]
    h = bn(h) * p["g1"] + p["be1"]
    h = jnp.where(h > 0, h, _NEG_SLOPE * h)
    h = h @ p["w2"] + p["b2"]
    h = bn(h) * p["g2"] + p["be2"]
    h = jnp.where(h > 0, h, _NEG_SLOPE * h)
    logits = h @ p["w3"] + p["b3"]
    return jax.nn.softmax(logits, axis=-1)


if __name__ == "__main__":
    STATE_SIZE = 8
    ACTION_SIZE = 4
    HIDDEN_SIZE = 32
    BATCH = 8

    key = jax.random.PRNGKey(0)
    k_x, k_p = jax.random.split(key)
    x = jax.random.normal(k_x, (BATCH, STATE_SIZE), jnp.float32)

    params = init_params(k_p, STATE_SIZE, ACTION_SIZE, HIDDEN_SIZE)
    padded_params = pad_params_for_tpu(params, HIDDEN_SIZE, ACTION_SIZE)

    out = model_actor_forward(x, padded_params, action_size=ACTION_SIZE)
    out = jax.block_until_ready(out)

    ref = _reference_forward(x, params)
    assert out.shape == (BATCH, ACTION_SIZE)
    assert jnp.allclose(out, ref, atol=1e-5, rtol=1e-5), "mismatch vs reference"
    # probabilities sum to 1 along the action dimension
    assert jnp.allclose(jnp.sum(out, axis=-1), 1.0, atol=1e-5)

    print("KERNEL_OK")
</pallas_src>

<mosaic_0001>
module attributes {stable_mosaic.version = 11 : i64} {
  func.func @_actor_kernel(%arg0: memref<8x8xf32, #tpu.memory_space<vmem>>, %arg1: memref<8x128xf32, #tpu.memory_space<vmem>>, %arg2: memref<1x128xf32, #tpu.memory_space<vmem>>, %arg3: memref<1x128xf32, #tpu.memory_space<vmem>>, %arg4: memref<1x128xf32, #tpu.memory_space<vmem>>, %arg5: memref<128x128xf32, #tpu.memory_space<vmem>>, %arg6: memref<1x128xf32, #tpu.memory_space<vmem>>, %arg7: memref<1x128xf32, #tpu.memory_space<vmem>>, %arg8: memref<1x128xf32, #tpu.memory_space<vmem>>, %arg9: memref<128x128xf32, #tpu.memory_space<vmem>>, %arg10: memref<1x128xf32, #tpu.memory_space<vmem>>, %arg11: memref<8x128xf32, #tpu.memory_space<vmem>>) attributes {dimension_semantics = [], scalar_prefetch = 0 : i64, scratch_operands = 0 : i64, tpu.core_type = #tpu.core_type<tc>} {
    %c0 = arith.constant 0 : index
    %c0_0 = arith.constant 0 : index
    %0 = vector.load %arg0[%c0, %c0_0] : memref<8x8xf32, #tpu.memory_space<vmem>>, vector<8x8xf32>
    %c0_1 = arith.constant 0 : index
    %c0_2 = arith.constant 0 : index
    %1 = vector.load %arg1[%c0_1, %c0_2] : memref<8x128xf32, #tpu.memory_space<vmem>>, vector<8x128xf32>
    %cst = arith.constant dense<0.000000e+00> : vector<8x128xf32>
    %2 = tpu.matmul %0, %1, %cst {dimension_numbers = #tpu.dot_dimension_numbers<[1], [0], [0], [1], [0, 0, 1, 1], [], []>} : vector<8x8xf32>, vector<8x128xf32>, vector<8x128xf32> -> vector<8x128xf32>
    %c0_3 = arith.constant 0 : index
    %c0_4 = arith.constant 0 : index
    %3 = vector.load %arg2[%c0_3, %c0_4] : memref<1x128xf32, #tpu.memory_space<vmem>>, vector<1x128xf32>
    %4 = vector.broadcast %3 : vector<1x128xf32> to vector<8x128xf32>
    %5 = arith.addf %2, %4 : vector<8x128xf32>
    %cst_5 = arith.constant dense<0.000000e+00> : vector<128xf32>
    %6 = vector.multi_reduction <add>, %5, %cst_5 [0] : vector<8x128xf32> to vector<128xf32>
    %7 = vector.shape_cast %6 : vector<128xf32> to vector<1x128xf32>
    %8 = arith.mulf %5, %5 : vector<8x128xf32>
    %cst_6 = arith.constant dense<0.000000e+00> : vector<128xf32>
    %9 = vector.multi_reduction <add>, %8, %cst_6 [0] : vector<8x128xf32> to vector<128xf32>
    %10 = vector.shape_cast %9 : vector<128xf32> to vector<1x128xf32>
    %cst_7 = arith.constant 1.250000e-01 : f32
    %11 = vector.broadcast %cst_7 : f32 to vector<1x128xf32>
    %12 = arith.mulf %7, %11 : vector<1x128xf32>
    %cst_8 = arith.constant 1.250000e-01 : f32
    %13 = vector.broadcast %cst_8 : f32 to vector<1x128xf32>
    %14 = arith.mulf %10, %13 : vector<1x128xf32>
    %15 = arith.mulf %12, %12 : vector<1x128xf32>
    %16 = arith.subf %14, %15 : vector<1x128xf32>
    %cst_9 = arith.constant 0.000000e+00 : f32
    %17 = vector.broadcast %cst_9 : f32 to vector<1x128xf32>
    %18 = arith.maximumf %16, %17 : vector<1x128xf32>
    %c0_10 = arith.constant 0 : index
    %c0_11 = arith.constant 0 : index
    %19 = vector.load %arg3[%c0_10, %c0_11] : memref<1x128xf32, #tpu.memory_space<vmem>>, vector<1x128xf32>
    %cst_12 = arith.constant 9.99999974E-6 : f32
    %20 = vector.broadcast %cst_12 : f32 to vector<1x128xf32>
    %21 = arith.addf %18, %20 : vector<1x128xf32>
    %22 = math.rsqrt %21 : vector<1x128xf32>
    %23 = arith.mulf %19, %22 : vector<1x128xf32>
    %c0_13 = arith.constant 0 : index
    %c0_14 = arith.constant 0 : index
    %24 = vector.load %arg4[%c0_13, %c0_14] : memref<1x128xf32, #tpu.memory_space<vmem>>, vector<1x128xf32>
    %25 = arith.mulf %12, %23 : vector<1x128xf32>
    %26 = arith.subf %24, %25 : vector<1x128xf32>
    %27 = vector.broadcast %23 : vector<1x128xf32> to vector<8x128xf32>
    %28 = arith.mulf %5, %27 : vector<8x128xf32>
    %29 = vector.broadcast %26 : vector<1x128xf32> to vector<8x128xf32>
    %30 = arith.addf %28, %29 : vector<8x128xf32>
    %cst_15 = arith.constant 0.000000e+00 : f32
    %31 = vector.broadcast %cst_15 : f32 to vector<8x128xf32>
    %32 = arith.cmpf ogt, %30, %31 : vector<8x128xf32>
    %cst_16 = arith.constant 0.00999999977 : f32
    %33 = vector.broadcast %cst_16 : f32 to vector<8x128xf32>
    %34 = arith.mulf %33, %30 : vector<8x128xf32>
    %35 = arith.select %32, %30, %34 : vector<8x128xi1>, vector<8x128xf32>
    %c0_17 = arith.constant 0 : index
    %c0_18 = arith.constant 0 : index
    %36 = vector.load %arg5[%c0_17, %c0_18] : memref<128x128xf32, #tpu.memory_space<vmem>>, vector<128x128xf32>
    %cst_19 = arith.constant dense<0.000000e+00> : vector<8x128xf32>
    %37 = tpu.matmul %35, %36, %cst_19 {dimension_numbers = #tpu.dot_dimension_numbers<[1], [0], [0], [1], [0, 0, 1, 1], [], []>} : vector<8x128xf32>, vector<128x128xf32>, vector<8x128xf32> -> vector<8x128xf32>
    %c0_20 = arith.constant 0 : index
    %c0_21 = arith.constant 0 : index
    %38 = vector.load %arg6[%c0_20, %c0_21] : memref<1x128xf32, #tpu.memory_space<vmem>>, vector<1x128xf32>
    %39 = vector.broadcast %38 : vector<1x128xf32> to vector<8x128xf32>
    %40 = arith.addf %37, %39 : vector<8x128xf32>
    %cst_22 = arith.constant dense<0.000000e+00> : vector<128xf32>
    %41 = vector.multi_reduction <add>, %40, %cst_22 [0] : vector<8x128xf32> to vector<128xf32>
    %42 = vector.shape_cast %41 : vector<128xf32> to vector<1x128xf32>
    %43 = arith.mulf %40, %40 : vector<8x128xf32>
    %cst_23 = arith.constant dense<0.000000e+00> : vector<128xf32>
    %44 = vector.multi_reduction <add>, %43, %cst_23 [0] : vector<8x128xf32> to vector<128xf32>
    %45 = vector.shape_cast %44 : vector<128xf32> to vector<1x128xf32>
    %cst_24 = arith.constant 1.250000e-01 : f32
    %46 = vector.broadcast %cst_24 : f32 to vector<1x128xf32>
    %47 = arith.mulf %42, %46 : vector<1x128xf32>
    %cst_25 = arith.constant 1.250000e-01 : f32
    %48 = vector.broadcast %cst_25 : f32 to vector<1x128xf32>
    %49 = arith.mulf %45, %48 : vector<1x128xf32>
    %50 = arith.mulf %47, %47 : vector<1x128xf32>
    %51 = arith.subf %49, %50 : vector<1x128xf32>
    %cst_26 = arith.constant 0.000000e+00 : f32
    %52 = vector.broadcast %cst_26 : f32 to vector<1x128xf32>
    %53 = arith.maximumf %51, %52 : vector<1x128xf32>
    %c0_27 = arith.constant 0 : index
    %c0_28 = arith.constant 0 : index
    %54 = vector.load %arg7[%c0_27, %c0_28] : memref<1x128xf32, #tpu.memory_space<vmem>>, vector<1x128xf32>
    %cst_29 = arith.constant 9.99999974E-6 : f32
    %55 = vector.broadcast %cst_29 : f32 to vector<1x128xf32>
    %56 = arith.addf %53, %55 : vector<1x128xf32>
    %57 = math.rsqrt %56 : vector<1x128xf32>
    %58 = arith.mulf %54, %57 : vector<1x128xf32>
    %c0_30 = arith.constant 0 : index
    %c0_31 = arith.constant 0 : index
    %59 = vector.load %arg8[%c0_30, %c0_31] : memref<1x128xf32, #tpu.memory_space<vmem>>, vector<1x128xf32>
    %60 = arith.mulf %47, %58 : vector<1x128xf32>
    %61 = arith.subf %59, %60 : vector<1x128xf32>
    %62 = vector.broadcast %58 : vector<1x128xf32> to vector<8x128xf32>
    %63 = arith.mulf %40, %62 : vector<8x128xf32>
    %64 = vector.broadcast %61 : vector<1x128xf32> to vector<8x128xf32>
    %65 = arith.addf %63, %64 : vector<8x128xf32>
    %cst_32 = arith.constant 0.000000e+00 : f32
    %66 = vector.broadcast %cst_32 : f32 to vector<8x128xf32>
    %67 = arith.cmpf ogt, %65, %66 : vector<8x128xf32>
    %cst_33 = arith.constant 0.00999999977 : f32
    %68 = vector.broadcast %cst_33 : f32 to vector<8x128xf32>
    %69 = arith.mulf %68, %65 : vector<8x128xf32>
    %70 = arith.select %67, %65, %69 : vector<8x128xi1>, vector<8x128xf32>
    %c0_34 = arith.constant 0 : index
    %c0_35 = arith.constant 0 : index
    %71 = vector.load %arg9[%c0_34, %c0_35] : memref<128x128xf32, #tpu.memory_space<vmem>>, vector<128x128xf32>
    %cst_36 = arith.constant dense<0.000000e+00> : vector<8x128xf32>
    %72 = tpu.matmul %70, %71, %cst_36 {dimension_numbers = #tpu.dot_dimension_numbers<[1], [0], [0], [1], [0, 0, 1, 1], [], []>} : vector<8x128xf32>, vector<128x128xf32>, vector<8x128xf32> -> vector<8x128xf32>
    %c0_37 = arith.constant 0 : index
    %c0_38 = arith.constant 0 : index
    %73 = vector.load %arg10[%c0_37, %c0_38] : memref<1x128xf32, #tpu.memory_space<vmem>>, vector<1x128xf32>
    %74 = vector.broadcast %73 : vector<1x128xf32> to vector<8x128xf32>
    %75 = arith.addf %72, %74 : vector<8x128xf32>
    %cst_39 = arith.constant dense<0xFF800000> : vector<8xf32>
    %76 = vector.multi_reduction <maximumf>, %75, %cst_39 [1] : vector<8x128xf32> to vector<8xf32>
    %77 = vector.shape_cast %76 : vector<8xf32> to vector<8x1xf32>
    %78 = vector.broadcast %77 : vector<8x1xf32> to vector<8x128xf32>
    %79 = arith.subf %75, %78 : vector<8x128xf32>
    %80 = math.exp %79 : vector<8x128xf32>
    %cst_40 = arith.constant dense<0.000000e+00> : vector<8xf32>
    %81 = vector.multi_reduction <add>, %80, %cst_40 [1] : vector<8x128xf32> to vector<8xf32>
    %82 = vector.shape_cast %81 : vector<8xf32> to vector<8x1xf32>
    %83 = tpu.reciprocal %82 {approx = true} : vector<8x1xf32> -> vector<8x1xf32>
    %84 = arith.mulf %82, %83 : vector<8x1xf32>
    %cst_41 = arith.constant 2.000000e+00 : f32
    %85 = vector.broadcast %cst_41 : f32 to vector<8x1xf32>
    %86 = arith.subf %85, %84 : vector<8x1xf32>
    %87 = arith.mulf %83, %86 : vector<8x1xf32>
    %88 = vector.broadcast %87 : vector<8x1xf32> to vector<8x128xf32>
    %89 = arith.mulf %80, %88 : vector<8x128xf32>
    %c0_42 = arith.constant 0 : index
    %c0_43 = arith.constant 0 : index
    %90 = vector.load %arg11[%c0_42, %c0_43] : memref<8x128xf32, #tpu.memory_space<vmem>>, vector<8x128xf32>
    tpu.vector_store %arg11[%c0_42, %c0_43], %89 {strides = array<i32>} : memref<8x128xf32, #tpu.memory_space<vmem>>, vector<8x128xf32>,
    return
  }
}

</mosaic_0001>

<llo_original>
// kernel: model_actor_forward.1
$region0: #{model_actor_forward.1}
  #allocation0 [shape = 'u32[]', space=smem, size = 0x4, offset = 0x4, fixed_abs, tag = 'smem constant byte address 0x4 - core index']
  #allocation1 [shape = 'u32[72,128]{1,0:T(1,128)}', space=vmem, size = 0x9000, scoped, tag = 'internal scratch']
  %s0 = inlined_call_operand.hbm [shape: f32[8,8], index: 0, kind: input, shape index: {}]
  %s1 = inlined_call_operand.hbm [shape: f32[8,128], index: 1, kind: input, shape index: {}]
  %s2 = inlined_call_operand.hbm [shape: f32[1,128], index: 2, kind: input, shape index: {}]
  %s3 = inlined_call_operand.vmem [shape: f32[1,128], index: 3, kind: input, shape index: {}]
  %s4 = inlined_call_operand.vmem [shape: f32[1,128], index: 4, kind: input, shape index: {}]
  %s5 = inlined_call_operand.hbm [shape: f32[128,128], index: 5, kind: input, shape index: {}]
  %s6 = inlined_call_operand.hbm [shape: f32[1,128], index: 6, kind: input, shape index: {}]
  %s7 = inlined_call_operand.vmem [shape: f32[1,128], index: 7, kind: input, shape index: {}]
  %s8 = inlined_call_operand.vmem [shape: f32[1,128], index: 8, kind: input, shape index: {}]
  %s9 = inlined_call_operand.hbm [shape: f32[128,128], index: 9, kind: input, shape index: {}]
  %s10 = inlined_call_operand.hbm [shape: f32[1,128], index: 10, kind: input, shape index: {}]
  %s11 = inlined_call_operand.vmem [shape: f32[8,128], index: 11, kind: output, shape index: {}]
  %s12 = sld [smem:[#allocation0]]
  $region82: #{model_actor_forward.1} parent=0
    _
  %s14 = ssub.s32 1, %s12
  %s15 = scalar_select 0, %s14, %s12
  $region1: #{model_actor_forward.1} parent=0
    #allocation2 [shape = 'u8[4096]{0}', space=vmem, size = 0x1000, scoped, tag = 'input window, operand 0, single buffered']
    #allocation3 [shape = 's32[1]{0}', space=sflag, size = 0x4, scoped, tag = 'scoped memory for model_actor_forward.1']
    #allocation4 [shape = 'u8[4096]{0}', space=vmem, size = 0x1000, scoped, tag = 'input window, operand 1, single buffered']
    #allocation5 [shape = 's32[1]{0}', space=sflag, size = 0x4, scoped, tag = 'scoped memory for model_actor_forward.1']
    #allocation6 [shape = 'u8[512]{0}', space=vmem, size = 0x400, scoped, tag = 'input window, operand 2, single buffered']
    #allocation7 [shape = 'u8[65536]{0}', space=vmem, size = 0x10000, scoped, tag = 'input window, operand 5, single buffered']
    #allocation8 [shape = 's32[1]{0}', space=sflag, size = 0x4, scoped, tag = 'scoped memory for model_actor_forward.1']
    #allocation9 [shape = 'u8[512]{0}', space=vmem, size = 0x400, scoped, tag = 'input window, operand 6, single buffered']
    #allocation10 [shape = 'u8[65536]{0}', space=vmem, size = 0x10000, scoped, tag = 'input window, operand 9, single buffered']
    #allocation11 [shape = 's32[1]{0}', space=sflag, size = 0x4, scoped, tag = 'scoped memory for model_actor_forward.1']
    #allocation12 [shape = 'u8[512]{0}', space=vmem, size = 0x400, scoped, tag = 'input window, operand 10, single buffered']
    %16 = vsyncpa [#allocation3], 0
    %17 = vsyncpa [#allocation5], 0
    %18 = vsyncpa [#allocation8], 0
    %19 = vsyncpa [#allocation11], 0
    // Predicated region
    $region2: #{model_actor_forward.1} parent=1 // pred_check
      _
    $region3: #{model_actor_forward.1} parent=1 // pred_check_branch
      %21 = sbr.rel (0) target = $region5
    $region4: #{model_actor_forward.1} parent=1 // pred_region
      %23 = vsyncadd [#allocation3], 0
      %s25 = sshll.u32 %s0, 4
      %s26 = int_to_ptr.hbm [resolvable:$true] %s25
      %s27 = sshll.u32 [#allocation2], 4
      %s28 = int_to_ptr.vmem [resolvable:$true] %s27
      %30 = dma.hbm_to_vmem [thread:$0]  %s26, 128, %s28, [#allocation3]
    $region5: #{model_actor_forward.1} parent=1 // pred_fallthru
      _
    // Predicated region
    $region6: #{model_actor_forward.1} parent=1 // pred_check
      _
    $region7: #{model_actor_forward.1} parent=1 // pred_check_branch
      %32 = sbr.rel (0) target = $region9
    $region8: #{model_actor_forward.1} parent=1 // pred_region
      %34 = vsyncadd [#allocation5], 0
      %s36 = sshll.u32 %s1, 4
      %s37 = int_to_ptr.hbm [resolvable:$true] %s36
      %s38 = sshll.u32 [#allocation4], 4
      %s39 = int_to_ptr.vmem [resolvable:$true] %s38
      %41 = dma.hbm_to_vmem [thread:$0]  %s37, 128, %s39, [#allocation5]
    $region9: #{model_actor_forward.1} parent=1 // pred_fallthru
      _
    // Predicated region
    $region10: #{model_actor_forward.1} parent=1 // pred_check
      _
    $region11: #{model_actor_forward.1} parent=1 // pred_check_branch
      %43 = sbr.rel (0) target = $region13
    $region12: #{model_actor_forward.1} parent=1 // pred_region
      %45 = vsyncadd [#allocation5], 0
      %s47 = sshll.u32 %s2, 4
      %s48 = int_to_ptr.hbm [resolvable:$true] %s47
      %s49 = sshll.u32 [#allocation6], 4
      %s50 = int_to_ptr.vmem [resolvable:$true] %s49
      %52 = dma.hbm_to_vmem [thread:$0]  %s48, 16, %s50, [#allocation5]
    $region13: #{model_actor_forward.1} parent=1 // pred_fallthru
      _
    // Predicated region
    $region14: #{model_actor_forward.1} parent=1 // pred_check
      _
    $region15: #{model_actor_forward.1} parent=1 // pred_check_branch
      %54 = sbr.rel (0) target = $region17
    $region16: #{model_actor_forward.1} parent=1 // pred_region
      _
    $region17: #{model_actor_forward.1} parent=1 // pred_fallthru
      _
    // Predicated region
    $region18: #{model_actor_forward.1} parent=1 // pred_check
      _
    $region19: #{model_actor_forward.1} parent=1 // pred_check_branch
      %56 = sbr.rel (0) target = $region21
    $region20: #{model_actor_forward.1} parent=1 // pred_region
      _
    $region21: #{model_actor_forward.1} parent=1 // pred_fallthru
      _
    // Predicated region
    $region22: #{model_actor_forward.1} parent=1 // pred_check
      _
    $region23: #{model_actor_forward.1} parent=1 // pred_check_branch
      %58 = sbr.rel (0) target = $region25
    $region24: #{model_actor_forward.1} parent=1 // pred_region
      %60 = vsyncadd [#allocation8], 0
      %s61 = sshll.u32 %s5, 4
      %s62 = int_to_ptr.hbm [resolvable:$true] %s61
      %s63 = sshll.u32 [#allocation7], 4
      %s64 = int_to_ptr.vmem [resolvable:$true] %s63
      %69 = dma.hbm_to_vmem [thread:$0]  %s62, 2048, %s64, [#allocation8], 128, 128, 8
    $region25: #{model_actor_forward.1} parent=1 // pred_fallthru
      _
    // Predicated region
    $region26: #{model_actor_forward.1} parent=1 // pred_check
      _
    $region27: #{model_actor_forward.1} parent=1 // pred_check_branch
      %71 = sbr.rel (0) target = $region29
    $region28: #{model_actor_forward.1} parent=1 // pred_region
      %73 = vsyncadd [#allocation8], 0
      %s75 = sshll.u32 %s6, 4
      %s76 = int_to_ptr.hbm [resolvable:$true] %s75
      %s77 = sshll.u32 [#allocation9], 4
      %s78 = int_to_ptr.vmem [resolvable:$true] %s77
      %80 = dma.hbm_to_vmem [thread:$0]  %s76, 16, %s78, [#allocation8]
    $region29: #{model_actor_forward.1} parent=1 // pred_fallthru
      _
    // Predicated region
    $region30: #{model_actor_forward.1} parent=1 // pred_check
      _
    $region31: #{model_actor_forward.1} parent=1 // pred_check_branch
      %82 = sbr.rel (0) target = $region33
    $region32: #{model_actor_forward.1} parent=1 // pred_region
      _
    $region33: #{model_actor_forward.1} parent=1 // pred_fallthru
      _
    // Predicated region
    $region34: #{model_actor_forward.1} parent=1 // pred_check
      _
    $region35: #{model_actor_forward.1} parent=1 // pred_check_branch
      %84 = sbr.rel (0) target = $region37
    $region36: #{model_actor_forward.1} parent=1 // pred_region
      _
    $region37: #{model_actor_forward.1} parent=1 // pred_fallthru
      _
    // Predicated region
    $region38: #{model_actor_forward.1} parent=1 // pred_check
      _
    $region39: #{model_actor_forward.1} parent=1 // pred_check_branch
      %86 = sbr.rel (0) target = $region41
    $region40: #{model_actor_forward.1} parent=1 // pred_region
      %88 = vsyncadd [#allocation11], 0
      %s89 = sshll.u32 %s9, 4
      %s90 = int_to_ptr.hbm [resolvable:$true] %s89
      %s91 = sshll.u32 [#allocation10], 4
      %s92 = int_to_ptr.vmem [resolvable:$true] %s91
      %97 = dma.hbm_to_vmem [thread:$0]  %s90, 2048, %s92, [#allocation11], 128, 128, 8
    $region41: #{model_actor_forward.1} parent=1 // pred_fallthru
      _
    // Predicated region
    $region42: #{model_actor_forward.1} parent=1 // pred_check
      _
    $region43: #{model_actor_forward.1} parent=1 // pred_check_branch
      %99 = sbr.rel (0) target = $region45
    $region44: #{model_actor_forward.1} parent=1 // pred_region
      %101 = vsyncadd [#allocation11], 0
      %s103 = sshll.u32 %s10, 4
      %s104 = int_to_ptr.hbm [resolvable:$true] %s103
      %s105 = sshll.u32 [#allocation12], 4
      %s106 = int_to_ptr.vmem [resolvable:$true] %s105
      %108 = dma.hbm_to_vmem [thread:$0]  %s104, 16, %s106, [#allocation11]
    $region45: #{model_actor_forward.1} parent=1 // pred_fallthru
      _
    // Predicated region
    $region46: #{model_actor_forward.1} parent=1 // pred_check
      _
    $region47: #{model_actor_forward.1} parent=1 // pred_check_branch
      %110 = sbr.rel (0) target = $region49
    $region48: #{model_actor_forward.1} parent=1 // pred_region
      %112 = dma.done [#allocation3], 128
    $region49: #{model_actor_forward.1} parent=1 // pred_fallthru
      _
    // Predicated region
    $region50: #{model_actor_forward.1} parent=1 // pred_check
      _
    $region51: #{model_actor_forward.1} parent=1 // pred_check_branch
      %114 = sbr.rel (0) target = $region53
    $region52: #{model_actor_forward.1} parent=1 // pred_region
      %116 = dma.done [#allocation5], 128
    $region53: #{model_actor_forward.1} parent=1 // pred_fallthru
      _
    // Predicated region
    $region54: #{model_actor_forward.1} parent=1 // pred_check
      _
    $region55: #{model_actor_forward.1} parent=1 // pred_check_branch
      %118 = sbr.rel (0) target = $region57
    $region56: #{model_actor_forward.1} parent=1 // pred_region
      %120 = dma.done [#allocation5], 16
    $region57: #{model_actor_forward.1} parent=1 // pred_fallthru
      _
    // Predicated region
    $region58: #{model_actor_forward.1} parent=1 // pred_check
      _
    $region59: #{model_actor_forward.1} parent=1 // pred_check_branch
      %122 = sbr.rel (0) target = $region61
    $region60: #{model_actor_forward.1} parent=1 // pred_region
      %124 = dma.done [#allocation8], 2048
    $region61: #{model_actor_forward.1} parent=1 // pred_fallthru
      _
    // Predicated region
    $region62: #{model_actor_forward.1} parent=1 // pred_check
      _
    $region63: #{model_actor_forward.1} parent=1 // pred_check_branch
      %126 = sbr.rel (0) target = $region65
    $region64: #{model_actor_forward.1} parent=1 // pred_region
      %128 = dma.done [#allocation8], 16
    $region65: #{model_actor_forward.1} parent=1 // pred_fallthru
      _
    // Predicated region
    $region66: #{model_actor_forward.1} parent=1 // pred_check
      _
    $region67: #{model_actor_forward.1} parent=1 // pred_check_branch
      %130 = sbr.rel (0) target = $region69
    $region68: #{model_actor_forward.1} parent=1 // pred_region
      %132 = dma.done [#allocation11], 2048
    $region69: #{model_actor_forward.1} parent=1 // pred_fallthru
      _
    // Predicated region
    $region70: #{model_actor_forward.1} parent=1 // pred_check
      _
    $region71: #{model_actor_forward.1} parent=1 // pred_check_branch
      %134 = sbr.rel (0) target = $region73
    $region72: #{model_actor_forward.1} parent=1 // pred_region
      %136 = dma.done [#allocation11], 16
    $region73: #{model_actor_forward.1} parent=1 // pred_fallthru
      _
    %v137 = vld [vmem:[#allocation2] sm:$0xff]
    %v138 = vld [vmem:[#allocation4] sm:$0xff]
    %v139 = vld [vmem:[#allocation6] sm:$0x1]
    %v141 = vperm.slane %v139, 0
    %vm143 = vcmask 64512
    %v145 = vsel %vm143, %v137, 0
    %147 = vmatpush.msra.mxu0 0.0
    %148 = vmatpush.msra.mxu0 0.0
    %149 = vmatpush.msra.mxu0 0.0
    %150 = vmatpush.msra.mxu0 0.0
    %151 = vmatpush.msra.mxu0 0.0
    %152 = vmatpush.msra.mxu0 0.0
    %153 = vmatpush.msra.mxu0 0.0
    %154 = vmatpush.msra.mxu0 0.0
    %155 = vmatpush.msra.mxu0 0.0
    %156 = vmatpush.msra.mxu0 0.0
    %157 = vmatpush.msra.mxu0 0.0
    %158 = vmatpush.msra.mxu0 0.0
    %159 = vmatpush.msra.mxu0 0.0
    %160 = vmatpush.msra.mxu0 0.0
    %161 = vmatpush.msra.mxu0 0.0
    %162 = vmatpush.msra.mxu0 %v138
    %163 = vmatmul.f32.gmra.mxu0 %v145
    %v164 = vpop.f32.mrf.mxu0
    %v165 = vadd.f32 %v141, %v164
    %166 = vdwg.mxu0
    %v167 = vrot.slane %v165, 4
    %v168 = vadd.f32 %v165, %v167
    %v169 = vrot.slane %v168, 2
    %v170 = vadd.f32 %v168, %v169
    %v171 = vrot.slane %v170, 1
    %v172 = vadd.f32 %v170, %v171
    %v173 = vmul.f32 %v165, %v165
    %v174 = vrot.slane %v173, 4
    %v175 = vadd.f32 %v173, %v174
    %v176 = vrot.slane %v175, 2
    %v177 = vadd.f32 %v175, %v176
    %v178 = vrot.slane %v177, 1
    %v179 = vadd.f32 %v177, %v178
    %v180 = vmul.f32 %v172, 0.125
    %v181 = vmul.f32 %v179, 0.125
    %v182 = vmul.f32 %v180, %v180
    %v183 = vsub.f32 %v181, %v182
    %v184 = vmax.f32 %v183, 0.0
    %v185 = vld [vmem:[%s3] sm:$0x1]
    %v186 = vadd.f32 %v184, 1e-05
    %v187 = vrsqrt.pop %v186
    %v188 = vmul.f32 %v187, %v186
    %v189 = vmul.f32 %v188, %v187
    %v190 = vmul.f32 0.5, %v189
    %v191 = vsub.f32 1.5, %v190
    %v192 = vmul.f32 %v187, %v191
    %vm193 = vweird.f32 %v186
    %vm194 = vweird.f32 %v187
    %vm195 = vmor %vm193, %vm194
    %v196 = vsel %vm195, %v187, %v192
    %v197 = vmul.f32 %v185, %v196
    %v198 = vld [vmem:[%s4] sm:$0x1]
    %v199 = vmul.f32 %v180, %v197
    %v200 = vsub.f32 %v198, %v199
    %v202 = vperm.slane %v197, 0
    %v204 = vmul.f32 %v165, %v202
    %v206 = vperm.slane %v200, 0
    %v208 = vadd.f32 %v204, %v206
    %vm209 = vcmp.gt.f32.partialorder %v208, 0.0
    %v210 = vmul.f32 %v208, 0.01
    %v211 = vsel %vm209, %v208, %v210
    %v212 = vld [vmem:[#allocation7] sm:$0xff]
    %v213 = vld [vmem:[#allocation7 + $0x8] sm:$0xff]
    %v214 = vld [vmem:[#allocation7 + $0x10] sm:$0xff]
    %v215 = vld [vmem:[#allocation7 + $0x18] sm:$0xff]
    %v216 = vld [vmem:[#allocation7 + $0x20] sm:$0xff]
    %v217 = vld [vmem:[#allocation7 + $0x28] sm:$0xff]
    %v218 = vld [vmem:[#allocation7 + $0x30] sm:$0xff]
    %v219 = vld [vmem:[#allocation7 + $0x38] sm:$0xff]
    %v220 = vld [vmem:[#allocation7 + $0x40] sm:$0xff]
    %v221 = vld [vmem:[#allocation7 + $0x48] sm:$0xff]
    %v222 = vld [vmem:[#allocation7 + $0x50] sm:$0xff]
    %v223 = vld [vmem:[#allocation7 + $0x58] sm:$0xff]
    %v224 = vld [vmem:[#allocation7 + $0x60] sm:$0xff]
    %v225 = vld [vmem:[#allocation7 + $0x68] sm:$0xff]
    %v226 = vld [vmem:[#allocation7 + $0x70] sm:$0xff]
    %v227 = vld [vmem:[#allocation7 + $0x78] sm:$0xff]
    %v228 = vld [vmem:[#allocation9] sm:$0x1]
    %v230 = vperm.slane %v228, 0
    %232 = vmatpush.msra.mxu0 %v227
    %233 = vmatpush.msra.mxu0 %v226
    %234 = vmatpush.msra.mxu0 %v225
    %235 = vmatpush.msra.mxu0 %v224
    %236 = vmatpush.msra.mxu0 %v223
    %237 = vmatpush.msra.mxu0 %v222
    %238 = vmatpush.msra.mxu0 %v221
    %239 = vmatpush.msra.mxu0 %v220
    %240 = vmatpush.msra.mxu0 %v219
    %241 = vmatpush.msra.mxu0 %v218
    %242 = vmatpush.msra.mxu0 %v217
    %243 = vmatpush.msra.mxu0 %v216
    %244 = vmatpush.msra.mxu0 %v215
    %245 = vmatpush.msra.mxu0 %v214
    %246 = vmatpush.msra.mxu0 %v213
    %247 = vmatpush.msra.mxu0 %v212
    %248 = vmatmul.f32.gmra.mxu0 %v211
    %v249 = vpop.f32.mrf.mxu0
    %v250 = vadd.f32 %v230, %v249
    %251 = vdwg.mxu0
    %v252 = vrot.slane %v250, 4
    %v253 = vadd.f32 %v250, %v252
    %v254 = vrot.slane %v253, 2
    %v255 = vadd.f32 %v253, %v254
    %v256 = vrot.slane %v255, 1
    %v257 = vadd.f32 %v255, %v256
    %v258 = vmul.f32 %v250, %v250
    %v259 = vrot.slane %v258, 4
    %v260 = vadd.f32 %v258, %v259
    %v261 = vrot.slane %v260, 2
    %v262 = vadd.f32 %v260, %v261
    %v263 = vrot.slane %v262, 1
    %v264 = vadd.f32 %v262, %v263
    %v265 = vmul.f32 %v257, 0.125
    %v266 = vmul.f32 %v264, 0.125
    %v267 = vmul.f32 %v265, %v265
    %v268 = vsub.f32 %v266, %v267
    %v269 = vmax.f32 %v268, 0.0
    %v270 = vld [vmem:[%s7] sm:$0x1]
    %v271 = vadd.f32 %v269, 1e-05
    %v272 = vrsqrt.pop %v271
    %v273 = vmul.f32 %v272, %v271
    %v274 = vmul.f32 %v273, %v272
    %v275 = vmul.f32 0.5, %v274
    %v276 = vsub.f32 1.5, %v275
    %v277 = vmul.f32 %v272, %v276
    %vm278 = vweird.f32 %v271
    %vm279 = vweird.f32 %v272
    %vm280 = vmor %vm278, %vm279
    %v281 = vsel %vm280, %v272, %v277
    %v282 = vmul.f32 %v270, %v281
    %v283 = vld [vmem:[%s8] sm:$0x1]
    %v284 = vmul.f32 %v265, %v282
    %v285 = vsub.f32 %v283, %v284
    %v287 = vperm.slane %v282, 0
    %v289 = vmul.f32 %v250, %v287
    %v291 = vperm.slane %v285, 0
    %v293 = vadd.f32 %v289, %v291
    %vm294 = vcmp.gt.f32.partialorder %v293, 0.0
    %v295 = vmul.f32 %v293, 0.01
    %v296 = vsel %vm294, %v293, %v295
    %v297 = vld [vmem:[#allocation10] sm:$0xff]
    %v298 = vld [vmem:[#allocation10 + $0x8] sm:$0xff]
    %v299 = vld [vmem:[#allocation10 + $0x10] sm:$0xff]
    %v300 = vld [vmem:[#allocation10 + $0x18] sm:$0xff]
    %v301 = vld [vmem:[#allocation10 + $0x20] sm:$0xff]
    %v302 = vld [vmem:[#allocation10 + $0x28] sm:$0xff]
    %v303 = vld [vmem:[#allocation10 + $0x30] sm:$0xff]
    %v304 = vld [vmem:[#allocation10 + $0x38] sm:$0xff]
    %v305 = vld [vmem:[#allocation10 + $0x40] sm:$0xff]
    %v306 = vld [vmem:[#allocation10 + $0x48] sm:$0xff]
    %v307 = vld [vmem:[#allocation10 + $0x50] sm:$0xff]
    %v308 = vld [vmem:[#allocation10 + $0x58] sm:$0xff]
    %v309 = vld [vmem:[#allocation10 + $0x60] sm:$0xff]
    %v310 = vld [vmem:[#allocation10 + $0x68] sm:$0xff]
    %v311 = vld [vmem:[#allocation10 + $0x70] sm:$0xff]
    %v312 = vld [vmem:[#allocation10 + $0x78] sm:$0xff]
    %v313 = vld [vmem:[#allocation12] sm:$0x1]
    %v315 = vperm.slane %v313, 0
    %317 = vmatpush.msra.mxu0 %v312
    %318 = vmatpush.msra.mxu0 %v311
    %319 = vmatpush.msra.mxu0 %v310
    %320 = vmatpush.msra.mxu0 %v309
    %321 = vmatpush.msra.mxu0 %v308
    %322 = vmatpush.msra.mxu0 %v307
    %323 = vmatpush.msra.mxu0 %v306
    %324 = vmatpush.msra.mxu0 %v305
    %325 = vmatpush.msra.mxu0 %v304
    %326 = vmatpush.msra.mxu0 %v303
    %327 = vmatpush.msra.mxu0 %v302
    %328 = vmatpush.msra.mxu0 %v301
    %329 = vmatpush.msra.mxu0 %v300
    %330 = vmatpush.msra.mxu0 %v299
    %331 = vmatpush.msra.mxu0 %v298
    %332 = vmatpush.msra.mxu0 %v297
    %333 = vmatmul.f32.gmra.mxu0 %v296
    %v334 = vpop.f32.mrf.mxu0
    %v335 = vadd.f32 %v315, %v334
    %336 = vdwg.mxu0
    %337 = vmax.xlane.f32.xlu0 %v335
    %v338 = vpop.xlane.xlu0 %337
    %v339 = vsub.f32 %v335, %v338
    %v340 = vmul.f32 %v339, 1.442695
    %v341 = vpow.pop %v340
    %342 = vadd.xlane.f32.xlu0 %v341
    %v343 = vpop.xlane.xlu0 %342
    %v344 = vrcp.pop %v343
    %v345 = vmul.f32 %v343, %v344
    %v346 = vsub.f32 2.0, %v345
    %v347 = vmul.f32 %v344, %v346
    %v348 = vmul.f32 %v341, %v347
    %349 = vst [vmem:[%s11] sm:$0xff] %v348
    // Predicated region
    $region74: #{model_actor_forward.1} parent=1 // pred_check
      _
    $region75: #{model_actor_forward.1} parent=1 // pred_check_branch
      %351 = sbr.rel (0) target = $region77
    $region76: #{model_actor_forward.1} parent=1 // pred_region
      _
    $region77: #{model_actor_forward.1} parent=1 // pred_fallthru
      _
    // Predicated region
    $region78: #{model_actor_forward.1} parent=1 // pred_check
      _
    $region79: #{model_actor_forward.1} parent=1 // pred_check_branch
      %353 = sbr.rel (0) target = $region81
    $region80: #{model_actor_forward.1} parent=1 // pred_region
      _
    $region81: #{model_actor_forward.1} parent=1 // pred_fallthru
      _
    %354 = vsyncpa [#allocation3], 1
    %355 = vsyncpa [#allocation5], 1
    %356 = vsyncpa [#allocation8], 1
    %357 = vsyncpa [#allocation11], 1

</llo_original>
